<compile_context>
chip_gen: v7x
topology: tpu7x:2x2x1
jax: 0.10.0
libtpu: 0.0.40
codegen_flags: <defaults>
</compile_context>

<pallas_src>
import jax
import jax.numpy as jnp
from jax.experimental import pallas as pl
from jax.experimental.pallas import tpu as pltpu


_MAX_WIDTH = 8192                 # cap on the lane-dense last dim
_TARGET_BLOCK_BYTES = 4 << 20     # ~4 MiB per block (x2 in + x2 out buffers = 16 MiB)
_FAST_PATH_BYTES = 512 * 1024     # below this, a fused XLA multiply wins
_VMEM_LIMIT_BYTES = 32 << 20      # safe on v5e / v6e / v7x


def _scale_kernel(scale_ref, x_ref, o_ref):
    # scale_ref: SMEM (1,) f32 scalar-prefetch parameter
    # x_ref / o_ref: VMEM (tile_rows, WIDTH) tiles
    s = scale_ref[0].astype(x_ref.dtype)      # scalar cast keeps the VPU path in x dtype
    o_ref[...] = x_ref[...] * s


def _pick_width(total: int):
    """Largest multiple-of-128 divisor of `total`, capped at _MAX_WIDTH (or None)."""
    start = min(_MAX_WIDTH, (total // 128) * 128)
    for w in range(start, 0, -128):
        if total % w == 0:
            return w
    return None


def scale_forward(x: jax.Array, scale: jax.Array, *, force_kernel: bool = False) -> jax.Array:
    """x: any-shaped array (e.g. NCHW). scale: shape (1,) learnable scalar (f32)."""
    orig_shape = x.shape
    dtype = x.dtype
    total = x.size
    itemsize = jnp.dtype(dtype).itemsize

    if total == 0:
        return x

    if not jnp.issubdtype(dtype, jnp.floating):
        # Integer/bool inputs: let XLA handle type promotion (mirrors torch).
        return x * scale[0]

    if (not force_kernel) and total * itemsize < _FAST_PATH_BYTES:
        # Tiny tensors: launch + per-step overhead dominates; fused XLA mul is faster.
        return x * scale.astype(dtype)[0]

    width = _pick_width(total)
    if width is not None:
        # Common case: exact reshape, no pad / slice HBM round-trips.
        padded_total = total
        x2d = x.reshape(total // width, width)
    else:
        # Rare ragged fallback (flat size not divisible by 128): pad < one row.
        width = 1024
        padded_total = -(-total // width) * width
        x2d = jnp.pad(x.reshape(-1), (0, padded_total - total)).reshape(-1, width)

    rows = padded_total // width
    sublane = max(8, 32 // max(itemsize, 1))   # 8 f32, 16 bf16, 32 int8

    # ~4 MiB blocks, rows aligned to the sublane quantum.
    tile_rows = max(sublane,
                    (_TARGET_BLOCK_BYTES // (width * itemsize)) // sublane * sublane)
    if tile_rows >= rows:
        tile_rows = rows                       # single block covering the full row dim

    num_blocks = pl.cdiv(rows, tile_rows)      # masked trailing block, no re-pad

    out2d = pl.pallas_call(
        _scale_kernel,
        out_shape=jax.ShapeDtypeStruct((rows, width), dtype),
        grid_spec=pltpu.PrefetchScalarGridSpec(
            num_scalar_prefetch=1,             # scale -> SMEM once, before the grid
            grid=(num_blocks,),
            in_specs=[pl.BlockSpec((tile_rows, width), lambda i, s: (i, 0))],
            out_specs=pl.BlockSpec((tile_rows, width), lambda i, s: (i, 0)),
        ),
        compiler_params=pltpu.CompilerParams(
            dimension_semantics=("parallel",),      # lets v7x shard rows across its 2 TCs
            vmem_limit_bytes=_VMEM_LIMIT_BYTES,     # 4 MiB blocks OK even on v5e
        ),
        cost_estimate=pl.CostEstimate(
            flops=total, transcendentals=0, bytes_accessed=2 * total * itemsize),
    )(scale.astype(jnp.float32), x2d)

    out = out2d.reshape(-1)
    if padded_total != total:
        out = out[:total]
    return out.reshape(orig_shape)


if __name__ == "__main__":
    key = jax.random.PRNGKey(0)
    # NCHW input, small shapes: batch=2, channels=4, spatial=16
    x = jax.random.normal(key, (2, 4, 16, 16), dtype=jnp.float32)

    # Deterministic parameter init, matching nn.Parameter(FloatTensor([1.0]))
    scale_init = jnp.array([1.0], dtype=jnp.float32)
    scale_other = jnp.array([1.5], dtype=jnp.float32)

    # 1) Default path (tiny input -> fused XLA fast path)
    out_fast = jax.block_until_ready(scale_forward(x, scale_init))
    assert out_fast.shape == x.shape and out_fast.dtype == x.dtype
    assert jnp.allclose(out_fast, x * scale_init[0], atol=1e-6, rtol=1e-6)

    # 2) Force the Pallas kernel (exact-divisor reshape path), non-trivial scale
    out_kern = jax.block_until_ready(scale_forward(x, scale_other, force_kernel=True))
    assert out_kern.shape == x.shape and out_kern.dtype == x.dtype
    assert jnp.allclose(out_kern, x * scale_other[0], atol=1e-6, rtol=1e-6)

    # 3) Ragged fallback path (flat size not divisible by 128)
    x_rag = jax.random.normal(jax.random.PRNGKey(1), (3, 5, 7, 11), dtype=jnp.float32)
    out_rag = jax.block_until_ready(scale_forward(x_rag, scale_other, force_kernel=True))
    assert out_rag.shape == x_rag.shape and out_rag.dtype == x_rag.dtype
    assert jnp.allclose(out_rag, x_rag * scale_other[0], atol=1e-6, rtol=1e-6)

    print("KERNEL_OK")
</pallas_src>

<mosaic_0001>
module attributes {stable_mosaic.version = 11 : i64} {
  func.func @_scale_kernel(%arg0: i32, %arg1: memref<1xf32, #tpu.memory_space<smem>>, %arg2: memref<1x2048xf32, #tpu.memory_space<vmem>>, %arg3: memref<1x2048xf32, #tpu.memory_space<vmem>>) attributes {dimension_semantics = [#tpu.dimension_semantics<parallel>], iteration_bounds = array<i64: 1>, scalar_prefetch = 1 : i64, scratch_operands = 0 : i64, tpu.core_type = #tpu.core_type<tc>, window_params = [{transform_indices = @transform_0, window_bounds = array<i64: 1, 2048>}, {transform_indices = @transform_1, window_bounds = array<i64: 1, 2048>}]} {
    %c0 = arith.constant 0 : index
    %0 = memref.load %arg1[%c0] : memref<1xf32, #tpu.memory_space<smem>>
    %c0_0 = arith.constant 0 : index
    %c0_1 = arith.constant 0 : index
    %1 = vector.load %arg2[%c0_0, %c0_1] : memref<1x2048xf32, #tpu.memory_space<vmem>>, vector<1x2048xf32>
    %2 = vector.broadcast %0 : f32 to vector<1x2048xf32>
    %3 = arith.mulf %1, %2 : vector<1x2048xf32>
    %c0_2 = arith.constant 0 : index
    %c0_3 = arith.constant 0 : index
    %4 = vector.load %arg3[%c0_2, %c0_3] : memref<1x2048xf32, #tpu.memory_space<vmem>>, vector<1x2048xf32>
    tpu.vector_store %arg3[%c0_2, %c0_3], %3 {strides = array<i32>} : memref<1x2048xf32, #tpu.memory_space<vmem>>, vector<1x2048xf32>,
    return
  }
  func.func @transform_0(%arg0: i32, %arg1: memref<1xf32, #tpu.memory_space<smem>>) -> (i32, i32) {
    %c0_i32 = arith.constant 0 : i32
    %c0_i32_0 = arith.constant 0 : i32
    return %arg0, %c0_i32 : i32, i32
  }
  func.func @transform_1(%arg0: i32, %arg1: memref<1xf32, #tpu.memory_space<smem>>) -> (i32, i32) {
    %c0_i32 = arith.constant 0 : i32
    %c0_i32_0 = arith.constant 0 : i32
    return %arg0, %c0_i32 : i32, i32
  }
}

</mosaic_0001>

<llo_original>
// kernel: tpu_custom_call.1
$region0: #{tpu_custom_call.1}
  #allocation0 [shape = 'u32[]', space=smem, size = 0x4, offset = 0x4, fixed_abs, tag = 'smem constant byte address 0x4 - core index']
  #allocation1 [shape = 'u32[144,128]{1,0:T(1,128)}', space=vmem, size = 0x12000, scoped, tag = 'internal scratch']
  #allocation2 [shape = 's32[1]{0}', space=sflag, size = 0x4, scoped, tag = 'scoped memory for tpu_custom_call.1']
  #allocation3 [shape = 'f32[1]{0:T(128)S(6)}', space=smem, size = 0x200, scoped, tag = 'prefetched SMEM operand 0']
  %s0 = inlined_call_operand.<no memory space> [shape: f32[1], index: 0, kind: input, shape index: {}]
  %s1 = inlined_call_operand.hbm [shape: f32[1,2048], index: 1, kind: input, shape index: {}]
  %s2 = inlined_call_operand.hbm [shape: f32[1,2048], index: 2, kind: output, shape index: {}]
  %s3 = sld [smem:[#allocation0]]
  $region18: #{tpu_custom_call.1} parent=0
    _
  %s5 = ssub.s32 1, %s3
  %s6 = scalar_select 0, %s5, %s3
  %7 = sst [smem:[#allocation3]] %s0
  $region1: #{tpu_custom_call.1} parent=0
    #allocation4 [shape = 'u8[8192]{0}', space=vmem, size = 0x2000, scoped, tag = 'input window, operand 1, single buffered']
    #allocation5 [shape = 's32[1]{0}', space=sflag, size = 0x4, scoped, tag = 'scoped memory for tpu_custom_call.1']
    #allocation6 [shape = 's32[1]{0}', space=sflag, size = 0x4, scoped, tag = 'scoped memory for tpu_custom_call.1']
    #allocation7 [shape = 'u8[8192]{0}', space=vmem, size = 0x2000, scoped, tag = 'output window, operand 0, single buffered']
    %8 = vsyncpa [#allocation5], 0
    %9 = vsyncpa [#allocation6], 0
    // Predicated region
    $region2: #{tpu_custom_call.1} parent=1 // pred_check
      _
    $region3: #{tpu_custom_call.1} parent=1 // pred_check_branch
      %11 = sbr.rel (0) target = $region5
    $region4: #{tpu_custom_call.1} parent=1 // pred_region
      %s13 = ssub.s32 256, 256
      %14 = vsyncadd [#allocation5], %s13
      %s16 = sshll.u32 [#allocation4], 4
      %s17 = int_to_ptr.vmem [resolvable:$true] %s16
      %19 = dma.hbm_to_vmem [thread:$0]  %s1, 256, %s17, [#allocation5]
    $region5: #{tpu_custom_call.1} parent=1 // pred_fallthru
      _
    // Predicated region
    $region6: #{tpu_custom_call.1} parent=1 // pred_check
      _
    $region7: #{tpu_custom_call.1} parent=1 // pred_check_branch
      %21 = sbr.rel (0) target = $region9
    $region8: #{tpu_custom_call.1} parent=1 // pred_region
      %22 = dma.done [#allocation5], 256
    $region9: #{tpu_custom_call.1} parent=1 // pred_fallthru
      _
    %s23 = sld [smem:[#allocation3]]
    %v24 = vld [vmem:[#allocation4] sm:$0xff]
    %v25 = vld [vmem:[#allocation4 + $0x8] sm:$0xff]
    %v26 = vstv %s23
    %v27 = vmul.f32 %v24, %v26
    %v28 = vmul.f32 %v25, %v26
    %29 = vst [vmem:[#allocation7] sm:$0xff] %v27
    %30 = vst [vmem:[#allocation7 + $0x8] sm:$0xff] %v28
    // Predicated region
    $region10: #{tpu_custom_call.1} parent=1 // pred_check
      _
    $region11: #{tpu_custom_call.1} parent=1 // pred_check_branch
      %32 = sbr.rel (0) target = $region13
    $region12: #{tpu_custom_call.1} parent=1 // pred_region
      %s34 = ssub.s32 256, 256
      %35 = vsyncadd [#allocation6], %s34
      %s37 = sshll.u32 [#allocation7], 4
      %s38 = int_to_ptr.vmem [resolvable:$true] %s37
      %40 = dma.vmem_to_hbm [thread:$0]  %s38, 256, %s2, [#allocation6]
    $region13: #{tpu_custom_call.1} parent=1 // pred_fallthru
      _
    // Predicated region
    $region14: #{tpu_custom_call.1} parent=1 // pred_check
      _
    $region15: #{tpu_custom_call.1} parent=1 // pred_check_branch
      %42 = sbr.rel (0) target = $region17
    $region16: #{tpu_custom_call.1} parent=1 // pred_region
      %43 = dma.done [#allocation6], 256
    $region17: #{tpu_custom_call.1} parent=1 // pred_fallthru
      _
    %44 = vsyncpa [#allocation5], 1
    %45 = vsyncpa [#allocation6], 1

</llo_original>
